<compile_context>
chip_gen: v5e
topology: v5e:2x2
jax: 0.10.0
libtpu: 0.0.40
codegen_flags: <defaults>
</compile_context>

<pallas_src>
import functools

import numpy as np
import jax
import jax.numpy as jnp
from jax import lax
from jax.experimental import pallas as pl
from jax.experimental.pallas import tpu as pltpu


def _rglru_kernel(x_ref, wi_ref, bi_ref, wa_ref, ba_ref, c_ref, h0_ref,
                  y_ref, last_h_ref, *, has_cache, b_tile, l_tile, matmul_dtype):
    """Processes one (b_tile, l_tile, W) tile; carries h in last_h_ref."""
    W = x_ref.shape[-1]
    M = b_tile * l_tile

    # First time-chunk of this batch tile: seed the carried hidden state.
    @pl.when(pl.program_id(1) == 0)
    def _init_carry():
        last_h_ref[...] = h0_ref[...]

    x3 = x_ref[...]                                     # (b_tile, l_tile, W)
    xm = x3.reshape(M, W).astype(matmul_dtype)          # shared MXU operand

    # Gate projections: two MXU matmuls against (block-diagonal) weights,
    # fp32 accumulation; emitted back-to-back so xm's vregs stay live.
    gate_x = jax.nn.sigmoid(
        jnp.dot(xm, wi_ref[...], preferred_element_type=jnp.float32)
        + bi_ref[...]).reshape(b_tile, l_tile, W)
    gate_a = jax.nn.sigmoid(
        jnp.dot(xm, wa_ref[...], preferred_element_type=jnp.float32)
        + ba_ref[...]).reshape(b_tile, l_tile, W)

    # c = -8 * softplus(a_param), precomputed once in the wrapper.
    log_a = gate_a * c_ref[...]
    a = jnp.exp(log_a)                                  # (b_tile, l_tile, W) fp32
    multiplier = jnp.sqrt(1.0 - a * a)                  # a*a instead of exp(2*log_a)

    if not has_cache:
        # reset is True only at global t == 0 (row 0 of the first time chunk).
        t_idx = lax.broadcasted_iota(jnp.int32, (1, l_tile, 1), 1)
        is_reset = jnp.logical_and(pl.program_id(1) == 0, t_idx == 0)
        multiplier = jnp.where(is_reset, 1.0, multiplier)

    nx = x3.astype(jnp.float32) * gate_x * multiplier   # normalized input (fp32)

    # Blocked (Hillis-Steele) scan over the time chunk. After log2(l_tile)
    # combine steps:  h_t = A[:, t] * h_carry + X[:, t]  for every t in chunk.
    A, X = a, nx
    d = 1
    while d < l_tile:
        A_prev = jnp.concatenate(
            [jnp.ones((b_tile, d, W), jnp.float32), A[:, :-d, :]], axis=1)
        X_prev = jnp.concatenate(
            [jnp.zeros((b_tile, d, W), jnp.float32), X[:, :-d, :]], axis=1)
        X = A * X_prev + X
        A = A * A_prev
        d *= 2

    h_carry = last_h_ref[...]                           # (b_tile, 1, W) fp32
    y = A * h_carry + X                                 # fp32 accumulation
    y_ref[...] = y.astype(y_ref.dtype)                  # one dense tile store
    last_h_ref[...] = y[:, l_tile - 1:l_tile, :]        # new carry / last_h


def _block_diag(w):
    """(H, bw, bw) per-head weights -> (W, W) block-diagonal matrix."""
    return jax.scipy.linalg.block_diag(*[w[i] for i in range(w.shape[0])])


def _largest_divisor_leq(n, cap):
    for d in range(min(n, cap), 0, -1):
        if n % d == 0:
            return d
    return 1


def _pick_l_tile(L, max_tile=256):
    """Time-chunk size: multiple of 8 dividing L (or the full sequence)."""
    if L <= max_tile:
        return L
    for t in range(max_tile - max_tile % 8, 7, -8):
        if L % t == 0:
            return t
    return L


def rglru_forward(x, params, cache=None, *, b_tile=None, l_tile=None,
                  matmul_dtype=jnp.bfloat16):
    """RG-LRU forward. x: (B, L, W). Returns (y: (B,L,W) x.dtype, last_h: (B,W) fp32)."""
    B, L, W = x.shape
    has_cache = cache is not None

    if b_tile is None:
        b_tile = _largest_divisor_leq(B, 8)
    if l_tile is None:
        l_tile = _pick_l_tile(L)
    assert B % b_tile == 0 and L % l_tile == 0
    assert l_tile == L or l_tile % 8 == 0, "time tile must be 8-aligned or full L"

    # Block-diagonal gate weights (dense layout, narrow dtype for the MXU).
    wi = _block_diag(params["input_gate_w"]).astype(matmul_dtype)   # (W, W)
    wa = _block_diag(params["a_gate_w"]).astype(matmul_dtype)       # (W, W)
    bi = params["input_gate_b"].reshape(1, W).astype(jnp.float32)
    ba = params["a_gate_b"].reshape(1, W).astype(jnp.float32)
    # Hoisted out of the kernel: pure function of parameters.
    c = (-8.0 * jax.nn.softplus(params["a_param"].astype(jnp.float32))).reshape(1, W)

    h0 = (cache.astype(jnp.float32) if has_cache
          else jnp.zeros((B, W), jnp.float32)).reshape(B, 1, W)

    # Explicit VMEM budget (v7x: 64 MiB physical / 32 MiB default scoped).
    tile = b_tile * l_tile * W
    need = (2 * tile * x.dtype.itemsize                       # x double-buffered
            + 2 * tile * x.dtype.itemsize                     # y double-buffered
            + 4 * W * W * jnp.dtype(matmul_dtype).itemsize    # wi, wa
            + 10 * tile * 4)                                  # fp32 intermediates
    vmem_limit = int(min(max(2 * need, 16 * 2**20), 56 * 2**20))

    kernel = functools.partial(_rglru_kernel, has_cache=has_cache,
                               b_tile=b_tile, l_tile=l_tile,
                               matmul_dtype=matmul_dtype)

    y, last_h = pl.pallas_call(
        kernel,
        out_shape=(
            jax.ShapeDtypeStruct((B, L, W), x.dtype),
            jax.ShapeDtypeStruct((B, 1, W), jnp.float32),
        ),
        grid_spec=pltpu.PrefetchScalarGridSpec(
            num_scalar_prefetch=0,
            grid=(B // b_tile, L // l_tile),
            in_specs=[
                pl.BlockSpec((b_tile, l_tile, W), lambda b, l: (b, l, 0)),  # x
                pl.BlockSpec((W, W), lambda b, l: (0, 0)),                  # wi
                pl.BlockSpec((1, W), lambda b, l: (0, 0)),                  # bi
                pl.BlockSpec((W, W), lambda b, l: (0, 0)),                  # wa
                pl.BlockSpec((1, W), lambda b, l: (0, 0)),                  # ba
                pl.BlockSpec((1, W), lambda b, l: (0, 0)),                  # -8*softplus(a_param)
                pl.BlockSpec((b_tile, 1, W), lambda b, l: (b, 0, 0)),       # h0 / cache
            ],
            out_specs=[
                pl.BlockSpec((b_tile, l_tile, W), lambda b, l: (b, l, 0)),  # y
                pl.BlockSpec((b_tile, 1, W), lambda b, l: (b, 0, 0)),       # last_h (carry)
            ],
        ),
        compiler_params=pltpu.CompilerParams(
            dimension_semantics=("parallel", "arbitrary"),
            vmem_limit_bytes=vmem_limit),
    )(x, wi, bi, wa, ba, c, h0)
    return y, last_h.reshape(B, W)


def rglru_reference(x, params, cache=None):
    """Pure-JAX reference mirroring the PyTorch module."""
    B, L, W = x.shape
    seg = jnp.arange(L) + (1 if cache is not None else 0)
    reset = (seg == 0)[None, :, None]                       # (1, L, 1)

    H, bw, _ = params["input_gate_w"].shape
    xh = x.reshape(B, L, H, bw)
    gate_x = jax.nn.sigmoid(
        jnp.einsum("blhi,hij->blhj", xh, params["input_gate_w"])
        + params["input_gate_b"]).reshape(B, L, W)
    gate_a = jax.nn.sigmoid(
        jnp.einsum("blhi,hij->blhj", xh, params["a_gate_w"])
        + params["a_gate_b"]).reshape(B, L, W)

    log_a = -8.0 * gate_a * jax.nn.softplus(params["a_param"])
    a = jnp.exp(log_a)
    a_square = jnp.exp(2.0 * log_a)
    gated_x = x * gate_x
    multiplier = jnp.sqrt(1.0 - a_square)
    multiplier = reset + (~reset) * multiplier
    nx = gated_x * multiplier.astype(x.dtype)

    h0 = jnp.zeros((B, W), jnp.float32) if cache is None else cache

    def step(h, inp):
        a_t, x_t = inp
        h_new = a_t.astype(jnp.float32) * h + x_t.astype(jnp.float32)
        return h_new, h_new.astype(x.dtype)

    h_last, y = lax.scan(step, h0, (a.swapaxes(0, 1), nx.swapaxes(0, 1)))
    return y.swapaxes(0, 1), h_last


def make_params(key, width, num_heads):
    bw = width // num_heads
    k1, k2, k3, k4 = jax.random.split(key, 4)
    scale = 1.0 / jnp.sqrt(bw)
    return {
        "input_gate_w": jax.random.normal(k1, (num_heads, bw, bw), jnp.float32) * scale,
        "input_gate_b": jax.random.normal(k2, (num_heads, bw), jnp.float32) * 0.1,
        "a_gate_w": jax.random.normal(k3, (num_heads, bw, bw), jnp.float32) * scale,
        "a_gate_b": jax.random.normal(k4, (num_heads, bw), jnp.float32) * 0.1,
        "a_param": jnp.linspace(0.1, 1.0, width, dtype=jnp.float32),
    }


if __name__ == "__main__":
    key = jax.random.PRNGKey(0)
    kx, kx2, kp, kc = jax.random.split(key, 4)

    B, L, W, H = 2, 8, 32, 4   # batch, seq, width, num_heads
    x = jax.random.normal(kx, (B, L, W), jnp.float32)
    params = make_params(kp, W, H)
    y_ref, h_ref = rglru_reference(x, params, cache=None)

    # 1) Exact-semantics check: f32 MXU operands, single time chunk.
    y, h = rglru_forward(x, params, cache=None, matmul_dtype=jnp.float32)
    y, h = jax.block_until_ready(y), jax.block_until_ready(h)
    assert jnp.allclose(y, y_ref, atol=2e-5, rtol=2e-5), "f32 path: y mismatch"
    assert jnp.allclose(h, h_ref, atol=2e-5, rtol=2e-5), "f32 path: last_h mismatch"

    # 2) Default fast path: bf16 MXU operands (benign quantization differences).
    yb, hb = rglru_forward(x, params, cache=None)
    yb = jax.block_until_ready(yb)
    assert jnp.allclose(yb, y_ref, atol=1e-1, rtol=1e-1), "bf16 path: y mismatch"
    assert jnp.allclose(hb, h_ref, atol=1e-1, rtol=1e-1), "bf16 path: last_h mismatch"

    # 3) Cache + time chunking (carry across L-grid) + b_tile < B.
    L2 = 16
    x2 = jax.random.normal(kx2, (B, L2, W), jnp.float32)
    cache = 0.5 * jax.random.normal(kc, (B, W), jnp.float32)
    y_ref2, h_ref2 = rglru_reference(x2, params, cache=cache)
    y2, h2 = rglru_forward(x2, params, cache=cache, b_tile=1, l_tile=8,
                           matmul_dtype=jnp.float32)
    y2 = jax.block_until_ready(y2)
    assert jnp.allclose(y2, y_ref2, atol=2e-5, rtol=2e-5), "chunked+cache: y mismatch"
    assert jnp.allclose(h2, h_ref2, atol=2e-5, rtol=2e-5), "chunked+cache: last_h mismatch"

    # 4) No cache + multiple time chunks (reset applied only to chunk 0, row 0).
    y_ref3, h_ref3 = rglru_reference(x2, params, cache=None)
    y3, h3 = rglru_forward(x2, params, cache=None, b_tile=2, l_tile=8,
                           matmul_dtype=jnp.float32)
    y3 = jax.block_until_ready(y3)
    assert jnp.allclose(y3, y_ref3, atol=2e-5, rtol=2e-5), "chunked+reset: y mismatch"
    assert jnp.allclose(h3, h_ref3, atol=2e-5, rtol=2e-5), "chunked+reset: last_h mismatch"

    print("KERNEL_OK")
</pallas_src>

<mosaic_0001>
module attributes {stable_mosaic.version = 11 : i64} {
  func.func @_rglru_kernel(%arg0: i32, %arg1: i32, %arg2: memref<2x8x32xf32, #tpu.memory_space<vmem>>, %arg3: memref<32x32xf32, #tpu.memory_space<vmem>>, %arg4: memref<1x32xf32, #tpu.memory_space<vmem>>, %arg5: memref<32x32xf32, #tpu.memory_space<vmem>>, %arg6: memref<1x32xf32, #tpu.memory_space<vmem>>, %arg7: memref<1x32xf32, #tpu.memory_space<vmem>>, %arg8: memref<2x1x32xf32, #tpu.memory_space<vmem>>, %arg9: memref<2x8x32xf32, #tpu.memory_space<vmem>>, %arg10: memref<2x1x32xf32, #tpu.memory_space<vmem>>) attributes {dimension_semantics = [#tpu.dimension_semantics<parallel>, #tpu.dimension_semantics<arbitrary>], iteration_bounds = array<i64: 1, 1>, scalar_prefetch = 0 : i64, scratch_operands = 0 : i64, tpu.core_type = #tpu.core_type<tc>, window_params = [{transform_indices = @transform_0, window_bounds = array<i64: 2, 8, 32>}, {pipeline_mode = #tpu.pipeline_mode<synchronous>, transform_indices = @transform_1, window_bounds = array<i64: 32, 32>}, {pipeline_mode = #tpu.pipeline_mode<synchronous>, transform_indices = @transform_2, window_bounds = array<i64: 1, 32>}, {pipeline_mode = #tpu.pipeline_mode<synchronous>, transform_indices = @transform_3, window_bounds = array<i64: 32, 32>}, {pipeline_mode = #tpu.pipeline_mode<synchronous>, transform_indices = @transform_4, window_bounds = array<i64: 1, 32>}, {pipeline_mode = #tpu.pipeline_mode<synchronous>, transform_indices = @transform_5, window_bounds = array<i64: 1, 32>}, {transform_indices = @transform_6, window_bounds = array<i64: 2, 1, 32>}, {transform_indices = @transform_7, window_bounds = array<i64: 2, 8, 32>}, {transform_indices = @transform_8, window_bounds = array<i64: 2, 1, 32>}]} {
    %c0_i32 = arith.constant 0 : i32
    %0 = arith.cmpi eq, %arg1, %c0_i32 : i32
    %1 = arith.extui %0 : i1 to i32
    %c0_i32_0 = arith.constant 0 : i32
    %2 = arith.cmpi ne, %1, %c0_i32_0 : i32
    scf.if %2 {
      %c0_35 = arith.constant 0 : index
      %c0_36 = arith.constant 0 : index
      %c0_37 = arith.constant 0 : index
      %82 = vector.load %arg8[%c0_35, %c0_36, %c0_37] : memref<2x1x32xf32, #tpu.memory_space<vmem>>, vector<2x1x32xf32>
      %c0_38 = arith.constant 0 : index
      %c0_39 = arith.constant 0 : index
      %c0_40 = arith.constant 0 : index
      %83 = vector.load %arg10[%c0_38, %c0_39, %c0_40] : memref<2x1x32xf32, #tpu.memory_space<vmem>>, vector<2x1x32xf32>
      tpu.vector_store %arg10[%c0_38, %c0_39, %c0_40], %82 {strides = array<i32>} : memref<2x1x32xf32, #tpu.memory_space<vmem>>, vector<2x1x32xf32>,
    } else {
    }
    %c0 = arith.constant 0 : index
    %c0_1 = arith.constant 0 : index
    %c0_2 = arith.constant 0 : index
    %3 = vector.load %arg2[%c0, %c0_1, %c0_2] : memref<2x8x32xf32, #tpu.memory_space<vmem>>, vector<2x8x32xf32>
    %4 = vector.shape_cast %3 : vector<2x8x32xf32> to vector<16x32xf32>
    %c0_3 = arith.constant 0 : index
    %c0_4 = arith.constant 0 : index
    %5 = vector.load %arg3[%c0_3, %c0_4] : memref<32x32xf32, #tpu.memory_space<vmem>>, vector<32x32xf32>
    %cst = arith.constant dense<0.000000e+00> : vector<16x32xf32>
    %6 = tpu.matmul %4, %5, %cst {dimension_numbers = #tpu.dot_dimension_numbers<[1], [0], [0], [1], [0, 0, 1, 1], [], []>} : vector<16x32xf32>, vector<32x32xf32>, vector<16x32xf32> -> vector<16x32xf32>
    %c0_5 = arith.constant 0 : index
    %c0_6 = arith.constant 0 : index
    %7 = vector.load %arg4[%c0_5, %c0_6] : memref<1x32xf32, #tpu.memory_space<vmem>>, vector<1x32xf32>
    %8 = vector.broadcast %7 : vector<1x32xf32> to vector<16x32xf32>
    %9 = arith.addf %6, %8 : vector<16x32xf32>
    %10 = arith.negf %9 : vector<16x32xf32>
    %11 = math.exp %10 : vector<16x32xf32>
    %cst_7 = arith.constant 1.000000e+00 : f32
    %12 = vector.broadcast %cst_7 : f32 to vector<16x32xf32>
    %13 = arith.addf %12, %11 : vector<16x32xf32>
    %14 = arith.divf %12, %13 : vector<16x32xf32>
    %15 = vector.shape_cast %14 : vector<16x32xf32> to vector<2x8x32xf32>
    %c0_8 = arith.constant 0 : index
    %c0_9 = arith.constant 0 : index
    %16 = vector.load %arg5[%c0_8, %c0_9] : memref<32x32xf32, #tpu.memory_space<vmem>>, vector<32x32xf32>
    %cst_10 = arith.constant dense<0.000000e+00> : vector<16x32xf32>
    %17 = tpu.matmul %4, %16, %cst_10 {dimension_numbers = #tpu.dot_dimension_numbers<[1], [0], [0], [1], [0, 0, 1, 1], [], []>} : vector<16x32xf32>, vector<32x32xf32>, vector<16x32xf32> -> vector<16x32xf32>
    %c0_11 = arith.constant 0 : index
    %c0_12 = arith.constant 0 : index
    %18 = vector.load %arg6[%c0_11, %c0_12] : memref<1x32xf32, #tpu.memory_space<vmem>>, vector<1x32xf32>
    %19 = vector.broadcast %18 : vector<1x32xf32> to vector<16x32xf32>
    %20 = arith.addf %17, %19 : vector<16x32xf32>
    %21 = arith.negf %20 : vector<16x32xf32>
    %22 = math.exp %21 : vector<16x32xf32>
    %cst_13 = arith.constant 1.000000e+00 : f32
    %23 = vector.broadcast %cst_13 : f32 to vector<16x32xf32>
    %24 = arith.addf %23, %22 : vector<16x32xf32>
    %25 = arith.divf %23, %24 : vector<16x32xf32>
    %26 = vector.shape_cast %25 : vector<16x32xf32> to vector<2x8x32xf32>
    %c0_14 = arith.constant 0 : index
    %c0_15 = arith.constant 0 : index
    %27 = vector.load %arg7[%c0_14, %c0_15] : memref<1x32xf32, #tpu.memory_space<vmem>>, vector<1x32xf32>
    %28 = vector.shape_cast %27 : vector<1x32xf32> to vector<1x1x32xf32>
    %29 = vector.broadcast %28 : vector<1x1x32xf32> to vector<2x8x32xf32>
    %30 = arith.mulf %26, %29 : vector<2x8x32xf32>
    %31 = math.exp %30 : vector<2x8x32xf32>
    %32 = arith.mulf %31, %31 : vector<2x8x32xf32>
    %cst_16 = arith.constant 1.000000e+00 : f32
    %33 = vector.broadcast %cst_16 : f32 to vector<2x8x32xf32>
    %34 = arith.subf %33, %32 : vector<2x8x32xf32>
    %35 = math.sqrt %34 : vector<2x8x32xf32>
    %36 = tpu.iota {dimensions = array<i32: 1>} : vector<1x8x1xi32>
    %c0_i32_17 = arith.constant 0 : i32
    %37 = arith.cmpi eq, %arg1, %c0_i32_17 : i32
    %c0_i32_18 = arith.constant 0 : i32
    %38 = vector.broadcast %c0_i32_18 : i32 to vector<1x8x1xi32>
    %39 = arith.cmpi eq, %36, %38 : vector<1x8x1xi32>
    %40 = vector.broadcast %37 : i1 to vector<1x8x1xi1>
    %41 = arith.andi %40, %39 : vector<1x8x1xi1>
    %cst_19 = arith.constant 1.000000e+00 : f32
    %42 = vector.shape_cast %41 : vector<1x8x1xi1> to vector<1x8x1xi1>
    %43 = vector.broadcast %42 : vector<1x8x1xi1> to vector<2x8x32xi1>
    %44 = vector.broadcast %cst_19 : f32 to vector<2x8x32xf32>
    %45 = arith.select %43, %44, %35 : vector<2x8x32xi1>, vector<2x8x32xf32>
    %46 = arith.mulf %3, %15 : vector<2x8x32xf32>
    %47 = arith.mulf %46, %45 : vector<2x8x32xf32>
    %cst_20 = arith.constant 1.000000e+00 : f32
    %48 = vector.broadcast %cst_20 : f32 to vector<2x1x32xf32>
    %49 = vector.extract_strided_slice %31 {offsets = [0, 0, 0], sizes = [2, 7, 32], strides = [1, 1, 1]} : vector<2x8x32xf32> to vector<2x7x32xf32>
    %50 = tpu.concatenate %48, %49 in 1 : vector<2x1x32xf32>, vector<2x7x32xf32> -> vector<2x8x32xf32>
    %cst_21 = arith.constant 0.000000e+00 : f32
    %51 = vector.broadcast %cst_21 : f32 to vector<2x1x32xf32>
    %52 = vector.extract_strided_slice %47 {offsets = [0, 0, 0], sizes = [2, 7, 32], strides = [1, 1, 1]} : vector<2x8x32xf32> to vector<2x7x32xf32>
    %53 = tpu.concatenate %51, %52 in 1 : vector<2x1x32xf32>, vector<2x7x32xf32> -> vector<2x8x32xf32>
    %54 = arith.mulf %31, %53 : vector<2x8x32xf32>
    %55 = arith.addf %54, %47 : vector<2x8x32xf32>
    %56 = arith.mulf %31, %50 : vector<2x8x32xf32>
    %cst_22 = arith.constant 1.000000e+00 : f32
    %57 = vector.broadcast %cst_22 : f32 to vector<2x2x32xf32>
    %58 = vector.extract_strided_slice %56 {offsets = [0, 0, 0], sizes = [2, 6, 32], strides = [1, 1, 1]} : vector<2x8x32xf32> to vector<2x6x32xf32>
    %59 = tpu.concatenate %57, %58 in 1 : vector<2x2x32xf32>, vector<2x6x32xf32> -> vector<2x8x32xf32>
    %cst_23 = arith.constant 0.000000e+00 : f32
    %60 = vector.broadcast %cst_23 : f32 to vector<2x2x32xf32>
    %61 = vector.extract_strided_slice %55 {offsets = [0, 0, 0], sizes = [2, 6, 32], strides = [1, 1, 1]} : vector<2x8x32xf32> to vector<2x6x32xf32>
    %62 = tpu.concatenate %60, %61 in 1 : vector<2x2x32xf32>, vector<2x6x32xf32> -> vector<2x8x32xf32>
    %63 = arith.mulf %56, %62 : vector<2x8x32xf32>
    %64 = arith.addf %63, %55 : vector<2x8x32xf32>
    %65 = arith.mulf %56, %59 : vector<2x8x32xf32>
    %cst_24 = arith.constant 1.000000e+00 : f32
    %66 = vector.broadcast %cst_24 : f32 to vector<2x4x32xf32>
    %67 = vector.extract_strided_slice %65 {offsets = [0, 0, 0], sizes = [2, 4, 32], strides = [1, 1, 1]} : vector<2x8x32xf32> to vector<2x4x32xf32>
    %68 = tpu.concatenate %66, %67 in 1 : vector<2x4x32xf32>, vector<2x4x32xf32> -> vector<2x8x32xf32>
    %cst_25 = arith.constant 0.000000e+00 : f32
    %69 = vector.broadcast %cst_25 : f32 to vector<2x4x32xf32>
    %70 = vector.extract_strided_slice %64 {offsets = [0, 0, 0], sizes = [2, 4, 32], strides = [1, 1, 1]} : vector<2x8x32xf32> to vector<2x4x32xf32>
    %71 = tpu.concatenate %69, %70 in 1 : vector<2x4x32xf32>, vector<2x4x32xf32> -> vector<2x8x32xf32>
    %72 = arith.mulf %65, %71 : vector<2x8x32xf32>
    %73 = arith.addf %72, %64 : vector<2x8x32xf32>
    %74 = arith.mulf %65, %68 : vector<2x8x32xf32>
    %c0_26 = arith.constant 0 : index
    %c0_27 = arith.constant 0 : index
    %c0_28 = arith.constant 0 : index
    %75 = vector.load %arg10[%c0_26, %c0_27, %c0_28] : memref<2x1x32xf32, #tpu.memory_space<vmem>>, vector<2x1x32xf32>
    %76 = vector.broadcast %75 : vector<2x1x32xf32> to vector<2x8x32xf32>
    %77 = arith.mulf %74, %76 : vector<2x8x32xf32>
    %78 = arith.addf %77, %73 : vector<2x8x32xf32>
    %c0_29 = arith.constant 0 : index
    %c0_30 = arith.constant 0 : index
    %c0_31 = arith.constant 0 : index
    %79 = vector.load %arg9[%c0_29, %c0_30, %c0_31] : memref<2x8x32xf32, #tpu.memory_space<vmem>>, vector<2x8x32xf32>
    tpu.vector_store %arg9[%c0_29, %c0_30, %c0_31], %78 {strides = array<i32>} : memref<2x8x32xf32, #tpu.memory_space<vmem>>, vector<2x8x32xf32>,
    %80 = vector.extract_strided_slice %78 {offsets = [0, 7, 0], sizes = [2, 1, 32], strides = [1, 1, 1]} : vector<2x8x32xf32> to vector<2x1x32xf32>
    %c0_32 = arith.constant 0 : index
    %c0_33 = arith.constant 0 : index
    %c0_34 = arith.constant 0 : index
    %81 = vector.load %arg10[%c0_32, %c0_33, %c0_34] : memref<2x1x32xf32, #tpu.memory_space<vmem>>, vector<2x1x32xf32>
    tpu.vector_store %arg10[%c0_32, %c0_33, %c0_34], %80 {strides = array<i32>} : memref<2x1x32xf32, #tpu.memory_space<vmem>>, vector<2x1x32xf32>,
    return
  }
  func.func @transform_0(%arg0: i32, %arg1: i32) -> (i32, i32, i32) {
    %c0_i32 = arith.constant 0 : i32
    %c0_i32_0 = arith.constant 0 : i32
    return %arg0, %arg1, %c0_i32 : i32, i32, i32
  }
  func.func @transform_1(%arg0: i32, %arg1: i32) -> (i32, i32) {
    %c0_i32 = arith.constant 0 : i32
    %c0_i32_0 = arith.constant 0 : i32
    %c0_i32_1 = arith.constant 0 : i32
    return %c0_i32, %c0_i32_0 : i32, i32
  }
  func.func @transform_2(%arg0: i32, %arg1: i32) -> (i32, i32) {
    %c0_i32 = arith.constant 0 : i32
    %c0_i32_0 = arith.constant 0 : i32
    %c0_i32_1 = arith.constant 0 : i32
    return %c0_i32, %c0_i32_0 : i32, i32
  }
  func.func @transform_3(%arg0: i32, %arg1: i32) -> (i32, i32) {
    %c0_i32 = arith.constant 0 : i32
    %c0_i32_0 = arith.constant 0 : i32
    %c0_i32_1 = arith.constant 0 : i32
    return %c0_i32, %c0_i32_0 : i32, i32
  }
  func.func @transform_4(%arg0: i32, %arg1: i32) -> (i32, i32) {
    %c0_i32 = arith.constant 0 : i32
    %c0_i32_0 = arith.constant 0 : i32
    %c0_i32_1 = arith.constant 0 : i32
    return %c0_i32, %c0_i32_0 : i32, i32
  }
  func.func @transform_5(%arg0: i32, %arg1: i32) -> (i32, i32) {
    %c0_i32 = arith.constant 0 : i32
    %c0_i32_0 = arith.constant 0 : i32
    %c0_i32_1 = arith.constant 0 : i32
    return %c0_i32, %c0_i32_0 : i32, i32
  }
  func.func @transform_6(%arg0: i32, %arg1: i32) -> (i32, i32, i32) {
    %c0_i32 = arith.constant 0 : i32
    %c0_i32_0 = arith.constant 0 : i32
    %c0_i32_1 = arith.constant 0 : i32
    return %arg0, %c0_i32, %c0_i32_0 : i32, i32, i32
  }
  func.func @transform_7(%arg0: i32, %arg1: i32) -> (i32, i32, i32) {
    %c0_i32 = arith.constant 0 : i32
    %c0_i32_0 = arith.constant 0 : i32
    return %arg0, %arg1, %c0_i32 : i32, i32, i32
  }
  func.func @transform_8(%arg0: i32, %arg1: i32) -> (i32, i32, i32) {
    %c0_i32 = arith.constant 0 : i32
    %c0_i32_0 = arith.constant 0 : i32
    %c0_i32_1 = arith.constant 0 : i32
    return %arg0, %c0_i32, %c0_i32_0 : i32, i32, i32
  }
}

</mosaic_0001>

<llo_original>
// kernel: tpu_custom_call.1
$region0: #{tpu_custom_call.1}
  #allocation0 [shape = 'u32[]', space=smem, size = 0x4, offset = 0x4, fixed_abs, tag = 'smem constant byte address 0x4 - core index']
  #allocation1 [shape = 'u32[72,128]{1,0:T(1,128)}', space=vmem, size = 0x9000, scoped, tag = 'internal scratch']
  %s0 = inlined_call_operand.hbm [shape: f32[2,8,32], index: 0, kind: input, shape index: {}]
  %s1 = inlined_call_operand.hbm [shape: f32[32,32], index: 1, kind: input, shape index: {}]
  %s2 = inlined_call_operand.vmem [shape: f32[1,32], index: 2, kind: input, shape index: {}]
  %s3 = inlined_call_operand.hbm [shape: f32[32,32], index: 3, kind: input, shape index: {}]
  %s4 = inlined_call_operand.hbm [shape: f32[1,32], index: 4, kind: input, shape index: {}]
  %s5 = inlined_call_operand.vmem [shape: f32[1,32], index: 5, kind: input, shape index: {}]
  %s6 = inlined_call_operand.vmem [shape: f32[2,1,32], index: 6, kind: input, shape index: {}]
  %s7 = inlined_call_operand.hbm [shape: f32[2,8,32], index: 7, kind: output, shape index: {0}]
  %s8 = inlined_call_operand.hbm [shape: f32[2,1,32], index: 8, kind: output, shape index: {1}]
  %9 = xla_tuple %s7, %s8
  %s10 = sld [smem:[#allocation0]]
  $region66: #{tpu_custom_call.1} parent=0
    _
  %s12 = ssub.s32 1, %s10
  %s13 = scalar_select 0, %s12, %s10
  $region1: #{tpu_custom_call.1} parent=0
    #allocation2 [shape = 'u8[8192]{0}', space=vmem, size = 0x2000, scoped, tag = 'input window, operand 0, single buffered']
    #allocation3 [shape = 's32[1]{0}', space=sflag, size = 0x4, scoped, tag = 'scoped memory for tpu_custom_call.1']
    #allocation4 [shape = 's32[1]{0}', space=sflag, size = 0x4, scoped, tag = 'scoped memory for tpu_custom_call.1']
    #allocation5 [shape = 'u8[16384]{0}', space=vmem, size = 0x4000, scoped, tag = 'input window, operand 1, single buffered']
    #allocation6 [shape = 's32[1]{0}', space=sflag, size = 0x4, scoped, tag = 'scoped memory for tpu_custom_call.1']
    #allocation7 [shape = 'u8[16384]{0}', space=vmem, size = 0x4000, scoped, tag = 'input window, operand 3, single buffered']
    #allocation8 [shape = 'u8[512]{0}', space=vmem, size = 0x400, scoped, tag = 'input window, operand 4, single buffered']
    #allocation9 [shape = 's32[1]{0}', space=sflag, size = 0x4, scoped, tag = 'scoped memory for tpu_custom_call.1']
    #allocation10 [shape = 'u8[8192]{0}', space=vmem, size = 0x2000, scoped, tag = 'output window, operand 0, single buffered']
    #allocation11 [shape = 'u8[1024]{0}', space=vmem, size = 0x400, scoped, tag = 'output window, operand 1, single buffered']
    #allocation12 [shape = 's32[1]{0}', space=sflag, size = 0x4, scoped, tag = 'scoped memory for tpu_custom_call.1']
    %14 = vsyncpa [#allocation3], 0
    %15 = vsyncpa [#allocation6], 0
    %16 = vsyncpa [#allocation9], 0
    %17 = vsyncpa [#allocation4], 0
    %18 = vsyncpa [#allocation12], 0
    // Predicated region
    $region2: #{tpu_custom_call.1} parent=1 // pred_check
      _
    $region3: #{tpu_custom_call.1} parent=1 // pred_check_branch
      %20 = sbr.rel (0) target = $region5
    $region4: #{tpu_custom_call.1} parent=1 // pred_region
      %22 = vsyncadd [#allocation3], 0
      %s23 = sshll.u32 %s0, 4
      %s24 = int_to_ptr.hbm [resolvable:$true] %s23
      %s25 = sshll.u32 [#allocation2], 4
      %s26 = int_to_ptr.vmem [resolvable:$true] %s25
      %31 = dma.hbm_to_vmem [thread:$0]  %s24, 256, %s26, [#allocation3], 128, 128, 8
    $region5: #{tpu_custom_call.1} parent=1 // pred_fallthru
      _
    // Predicated region
    $region6: #{tpu_custom_call.1} parent=1 // pred_check
      _
    $region7: #{tpu_custom_call.1} parent=1 // pred_check_branch
      %33 = sbr.rel (0) target = $region9
    $region8: #{tpu_custom_call.1} parent=1 // pred_region
      %35 = vsyncadd [#allocation6], 0
      %s36 = sshll.u32 %s1, 4
      %s37 = int_to_ptr.hbm [resolvable:$true] %s36
      %s38 = sshll.u32 [#allocation5], 4
      %s39 = int_to_ptr.vmem [resolvable:$true] %s38
      %44 = dma.hbm_to_vmem [thread:$0]  %s37, 512, %s39, [#allocation6], 128, 128, 8
    $region9: #{tpu_custom_call.1} parent=1 // pred_fallthru
      _
    // Predicated region
    $region10: #{tpu_custom_call.1} parent=1 // pred_check
      _
    $region11: #{tpu_custom_call.1} parent=1 // pred_check_branch
      %46 = sbr.rel (0) target = $region13
    $region12: #{tpu_custom_call.1} parent=1 // pred_region
      _
    $region13: #{tpu_custom_call.1} parent=1 // pred_fallthru
      _
    // Predicated region
    $region14: #{tpu_custom_call.1} parent=1 // pred_check
      _
    $region15: #{tpu_custom_call.1} parent=1 // pred_check_branch
      %48 = sbr.rel (0) target = $region17
    $region16: #{tpu_custom_call.1} parent=1 // pred_region
      %50 = vsyncadd [#allocation6], 0
      %s51 = sshll.u32 %s3, 4
      %s52 = int_to_ptr.hbm [resolvable:$true] %s51
      %s53 = sshll.u32 [#allocation7], 4
      %s54 = int_to_ptr.vmem [resolvable:$true] %s53
      %59 = dma.hbm_to_vmem [thread:$0]  %s52, 512, %s54, [#allocation6], 128, 128, 8
    $region17: #{tpu_custom_call.1} parent=1 // pred_fallthru
      _
    // Predicated region
    $region18: #{tpu_custom_call.1} parent=1 // pred_check
      _
    $region19: #{tpu_custom_call.1} parent=1 // pred_check_branch
      %61 = sbr.rel (0) target = $region21
    $region20: #{tpu_custom_call.1} parent=1 // pred_region
      %63 = vsyncadd [#allocation9], 0
      %s65 = sshll.u32 %s4, 4
      %s66 = int_to_ptr.hbm [resolvable:$true] %s65
      %s67 = sshll.u32 [#allocation8], 4
      %s68 = int_to_ptr.vmem [resolvable:$true] %s67
      %70 = dma.hbm_to_vmem [thread:$0]  %s66, 16, %s68, [#allocation9]
    $region21: #{tpu_custom_call.1} parent=1 // pred_fallthru
      _
    // Predicated region
    $region22: #{tpu_custom_call.1} parent=1 // pred_check
      _
    $region23: #{tpu_custom_call.1} parent=1 // pred_check_branch
      %72 = sbr.rel (0) target = $region25
    $region24: #{tpu_custom_call.1} parent=1 // pred_region
      _
    $region25: #{tpu_custom_call.1} parent=1 // pred_fallthru
      _
    // Predicated region
    $region26: #{tpu_custom_call.1} parent=1 // pred_check
      _
    $region27: #{tpu_custom_call.1} parent=1 // pred_check_branch
      %74 = sbr.rel (0) target = $region29
    $region28: #{tpu_custom_call.1} parent=1 // pred_region
      _
    $region29: #{tpu_custom_call.1} parent=1 // pred_fallthru
      _
    // Predicated region
    $region30: #{tpu_custom_call.1} parent=1 // pred_check
      _
    $region31: #{tpu_custom_call.1} parent=1 // pred_check_branch
      %76 = sbr.rel (0) target = $region33
    $region32: #{tpu_custom_call.1} parent=1 // pred_region
      %78 = dma.done [#allocation3], 256
    $region33: #{tpu_custom_call.1} parent=1 // pred_fallthru
      _
    // Predicated region
    $region34: #{tpu_custom_call.1} parent=1 // pred_check
      _
    $region35: #{tpu_custom_call.1} parent=1 // pred_check_branch
      %80 = sbr.rel (0) target = $region37
    $region36: #{tpu_custom_call.1} parent=1 // pred_region
      %82 = dma.done [#allocation6], 512
    $region37: #{tpu_custom_call.1} parent=1 // pred_fallthru
      _
    // Predicated region
    $region38: #{tpu_custom_call.1} parent=1 // pred_check
      _
    $region39: #{tpu_custom_call.1} parent=1 // pred_check_branch
      %84 = sbr.rel (0) target = $region41
    $region40: #{tpu_custom_call.1} parent=1 // pred_region
      %86 = dma.done [#allocation6], 512
    $region41: #{tpu_custom_call.1} parent=1 // pred_fallthru
      _
    // Predicated region
    $region42: #{tpu_custom_call.1} parent=1 // pred_check
      _
    $region43: #{tpu_custom_call.1} parent=1 // pred_check_branch
      %88 = sbr.rel (0) target = $region45
    $region44: #{tpu_custom_call.1} parent=1 // pred_region
      %90 = dma.done [#allocation9], 16
    $region45: #{tpu_custom_call.1} parent=1 // pred_fallthru
      _
    %p91 = scmp.eq.s32.totalorder 0, 0
    // Predicated region
    $region46: #{tpu_custom_call.1} parent=1 // pred_check
      %p92 = pneg %p91
    $region47: #{tpu_custom_call.1} parent=1 // pred_check_branch
      %94 = sbr.rel (%p92) target = $region49
    $region48: #{tpu_custom_call.1} parent=1 // pred_region
      %v95 = vld [vmem:[%s6] sm:$0x1]
      %v96 = vld [vmem:[%s6 + $0x1] sm:$0x1]
      %vm97 = vcmask 253952
      %98 = vst.msk [vmem:[#allocation11] sm:$0x1] %vm97, %v95
      %99 = vst.msk [vmem:[#allocation11 + $0x1] sm:$0x1] %vm97, %v96
    $region49: #{tpu_custom_call.1} parent=1 // pred_fallthru
      _
    %v100 = vld [vmem:[#allocation2] sm:$0xff]
    %v101 = vld [vmem:[#allocation2 + $0x8] sm:$0xff]
    %v102 = vld [vmem:[#allocation5] sm:$0xff]
    %v103 = vld [vmem:[#allocation5 + $0x8] sm:$0xff]
    %v104 = vld [vmem:[#allocation5 + $0x10] sm:$0xff]
    %v105 = vld [vmem:[#allocation5 + $0x18] sm:$0xff]
    %v106 = vld [vmem:[%s2] sm:$0x1]
    %v108 = vperm.slane %v106, 0
    %vm110 = vcmask 261120
    %v112 = vsel %vm110, %v100, 0
    %v115 = vsel %vm110, %v101, 0
    %117 = vmatpush.msra.mxu0 0.0
    %118 = vmatpush.msra.mxu0 0.0
    %119 = vmatpush.msra.mxu0 0.0
    %120 = vmatpush.msra.mxu0 0.0
    %121 = vmatpush.msra.mxu0 0.0
    %122 = vmatpush.msra.mxu0 0.0
    %123 = vmatpush.msra.mxu0 0.0
    %124 = vmatpush.msra.mxu0 0.0
    %125 = vmatpush.msra.mxu0 0.0
    %126 = vmatpush.msra.mxu0 0.0
    %127 = vmatpush.msra.mxu0 0.0
    %128 = vmatpush.msra.mxu0 0.0
    %129 = vmatpush.msra.mxu0 %v105
    %130 = vmatpush.msra.mxu0 %v104
    %131 = vmatpush.msra.mxu0 %v103
    %132 = vmatpush.msra.mxu0 %v102
    %133 = vmatmul.f32.gmra.mxu0 %v112
    %v134 = vpop.f32.mrf.mxu0
    %v135 = vadd.f32 %v108, %v134
    %136 = vmatmul.f32.gmra.mxu0 %v115
    %v137 = vpop.f32.mrf.mxu0
    %v138 = vadd.f32 %v108, %v137
    %139 = vdwg.mxu0
    %v140 = vxor.u32 %v135, 2147483648
    %v141 = vxor.u32 %v138, 2147483648
    %v142 = vmul.f32 %v140, 1.442695
    %v143 = vpow.pop %v142
    %v144 = vmul.f32 %v141, 1.442695
    %v145 = vpow.pop %v144
    %v146 = vadd.f32 %v143, 1.0
    %v147 = vadd.f32 %v145, 1.0
    %v148 = vrcp.pop %v146
    %v149 = vmul.f32 %v146, %v148
    %v150 = vsub.f32 1.0, %v149
    %v151 = vmul.f32 %v148, %v150
    %v152 = vadd.f32 %v148, %v151
    %vm153 = vweird.f32 %v146
    %vm154 = vweird.f32 %v148
    %vm155 = vmor %vm153, %vm154
    %v156 = vsel %vm155, %v148, %v152
    %v157 = vand.u32 2147483647, %v146
    %vm158 = vcmp.eq.f32.partialorder %v157, 8.507059e+37
    %v159 = vand.u32 %v146, 2147483648
    %v160 = vor.u32 1.1754944e-38, %v159
    %v161 = vsel %vm158, %v160, %v156
    %v162 = vmul.f32 1.0, %v161
    %v163 = vrcp.pop %v147
    %v164 = vmul.f32 %v147, %v163
    %v165 = vsub.f32 1.0, %v164
    %v166 = vmul.f32 %v163, %v165
    %v167 = vadd.f32 %v163, %v166
    %vm168 = vweird.f32 %v147
    %vm169 = vweird.f32 %v163
    %vm170 = vmor %vm168, %vm169
    %v171 = vsel %vm170, %v163, %v167
    %v172 = vand.u32 2147483647, %v147
    %vm173 = vcmp.eq.f32.partialorder %v172, 8.507059e+37
    %v174 = vand.u32 %v147, 2147483648
    %v175 = vor.u32 1.1754944e-38, %v174
    %v176 = vsel %vm173, %v175, %v171
    %v177 = vmul.f32 1.0, %v176
    %v178 = vld [vmem:[#allocation7] sm:$0xff]
    %v179 = vld [vmem:[#allocation7 + $0x8] sm:$0xff]
    %v180 = vld [vmem:[#allocation7 + $0x10] sm:$0xff]
    %v181 = vld [vmem:[#allocation7 + $0x18] sm:$0xff]
    %v182 = vld [vmem:[#allocation8] sm:$0x1]
    %v184 = vperm.slane %v182, 0
    %186 = vmatpush.msra.mxu0 0.0
    %187 = vmatpush.msra.mxu0 0.0
    %188 = vmatpush.msra.mxu0 0.0
    %189 = vmatpush.msra.mxu0 0.0
    %190 = vmatpush.msra.mxu0 0.0
    %191 = vmatpush.msra.mxu0 0.0
    %192 = vmatpush.msra.mxu0 0.0
    %193 = vmatpush.msra.mxu0 0.0
    %194 = vmatpush.msra.mxu0 0.0
    %195 = vmatpush.msra.mxu0 0.0
    %196 = vmatpush.msra.mxu0 0.0
    %197 = vmatpush.msra.mxu0 0.0
    %198 = vmatpush.msra.mxu0 %v181
    %199 = vmatpush.msra.mxu0 %v180
    %200 = vmatpush.msra.mxu0 %v179
    %201 = vmatpush.msra.mxu0 %v178
    %202 = vmatmul.f32.gmra.mxu0 %v112
    %v203 = vpop.f32.mrf.mxu0
    %v204 = vadd.f32 %v184, %v203
    %205 = vmatmul.f32.gmra.mxu0 %v115
    %v206 = vpop.f32.mrf.mxu0
    %v207 = vadd.f32 %v184, %v206
    %208 = vdwg.mxu0
    %v209 = vxor.u32 %v204, 2147483648
    %v210 = vxor.u32 %v207, 2147483648
    %v211 = vmul.f32 %v209, 1.442695
    %v212 = vpow.pop %v211
    %v213 = vmul.f32 %v210, 1.442695
    %v214 = vpow.pop %v213
    %v215 = vadd.f32 %v212, 1.0
    %v216 = vadd.f32 %v214, 1.0
    %v217 = vrcp.pop %v215
    %v218 = vmul.f32 %v215, %v217
    %v219 = vsub.f32 1.0, %v218
    %v220 = vmul.f32 %v217, %v219
    %v221 = vadd.f32 %v217, %v220
    %vm222 = vweird.f32 %v215
    %vm223 = vweird.f32 %v217
    %vm224 = vmor %vm222, %vm223
    %v225 = vsel %vm224, %v217, %v221
    %v226 = vand.u32 2147483647, %v215
    %vm227 = vcmp.eq.f32.partialorder %v226, 8.507059e+37
    %v228 = vand.u32 %v215, 2147483648
    %v229 = vor.u32 1.1754944e-38, %v228
    %v230 = vsel %vm227, %v229, %v225
    %v231 = vmul.f32 1.0, %v230
    %v232 = vrcp.pop %v216
    %v233 = vmul.f32 %v216, %v232
    %v234 = vsub.f32 1.0, %v233
    %v235 = vmul.f32 %v232, %v234
    %v236 = vadd.f32 %v232, %v235
    %vm237 = vweird.f32 %v216
    %vm238 = vweird.f32 %v232
    %vm239 = vmor %vm237, %vm238
    %v240 = vsel %vm239, %v232, %v236
    %v241 = vand.u32 2147483647, %v216
    %vm242 = vcmp.eq.f32.partialorder %v241, 8.507059e+37
    %v243 = vand.u32 %v216, 2147483648
    %v244 = vor.u32 1.1754944e-38, %v243
    %v245 = vsel %vm242, %v244, %v240
    %v246 = vmul.f32 1.0, %v245
    %v247 = vld [vmem:[%s5] sm:$0x1]
    %v249 = vperm.slane %v247, 0
    %v251 = vmul.f32 %v231, %v249
    %v252 = vmul.f32 %v246, %v249
    %v253 = vmul.f32 %v251, 1.442695
    %v254 = vpow.pop %v253
    %v255 = vmul.f32 %v252, 1.442695
    %v256 = vpow.pop %v255
    %v257 = vmul.f32 %v254, %v254
    %v258 = vmul.f32 %v256, %v256
    %v259 = vsub.f32 1.0, %v257
    %v260 = vsub.f32 1.0, %v258
    %v261 = vrsqrt.pop %v259
    %v262 = vmul.f32 %v261, %v259
    %v263 = vmul.f32 %v262, %v261
    %v264 = vmul.f32 0.5, %v263
    %v265 = vsub.f32 1.5, %v264
    %v266 = vmul.f32 %v261, %v265
    %v267 = vmul.f32 %v259, %v266
    %vm268 = vcmp.eq.f32.partialorder %v259, inf
    %v269 = vsel %vm268, %v259, %v267
    %vm270 = vcmp.eq.f32.partialorder %v259, 0.0
    %v271 = vand.u32 %v259, 2147483648
    %v272 = vsel %vm270, %v271, %v269
    %v273 = vrsqrt.pop %v260
    %v274 = vmul.f32 %v273, %v260
    %v275 = vmul.f32 %v274, %v273
    %v276 = vmul.f32 0.5, %v275
    %v277 = vsub.f32 1.5, %v276
    %v278 = vmul.f32 %v273, %v277
    %v279 = vmul.f32 %v260, %v278
    %vm280 = vcmp.eq.f32.partialorder %v260, inf
    %v281 = vsel %vm280, %v260, %v279
    %vm282 = vcmp.eq.f32.partialorder %v260, 0.0
    %v283 = vand.u32 %v260, 2147483648
    %v284 = vsel %vm282, %v283, %v281
    %v285 = vlaneseq
    %v286 = vshrl.u32 %v285, 7
    %vm287 = vcmp.eq.s32.totalorder %v286, 0
    %s288 = scalar_select %p91, 1, 0
    %v289 = vstv %s288
    %vm290 = vcmp.eq.s32.totalorder %v289, 1
    %vm291 = vmand %vm290, %vm287
    %v292 = vsel %vm291, 1, 0
    %vm293 = vcmp.eq.s32.totalorder %v292, 1
    %v294 = vsel %vm293, 1.0, %v272
    %v295 = vsel %vm293, 1.0, %v284
    %v296 = vmul.f32 %v100, %v162
    %v297 = vmul.f32 %v101, %v177
    %v298 = vmul.f32 %v296, %v294
    %v299 = vmul.f32 %v297, %v295
    %v302 = vrot.slane %v254, 7
    %v303 = vrot.slane %v256, 7
    %vm306 = vcmask 1040384
    %v307 = vsel %vm306, 1.0, %v302
    %v308 = vsel %vm306, 1.0, %v303
    %v311 = vrot.slane %v298, 7
    %v312 = vrot.slane %v299, 7
    %v315 = vsel %vm306, 0.0, %v311
    %v316 = vsel %vm306, 0.0, %v312
    %v317 = vmul.f32 %v254, %v315
    %v318 = vmul.f32 %v256, %v316
    %v319 = vadd.f32 %v317, %v298
    %v320 = vadd.f32 %v318, %v299
    %v321 = vmul.f32 %v254, %v307
    %v322 = vmul.f32 %v256, %v308
    %v325 = vrot.slane %v321, 6
    %v326 = vrot.slane %v322, 6
    %vm329 = vcmask 1041408
    %v330 = vsel %vm329, 1.0, %v325
    %v331 = vsel %vm329, 1.0, %v326
    %v334 = vrot.slane %v319, 6
    %v335 = vrot.slane %v320, 6
    %v338 = vsel %vm329, 0.0, %v334
    %v339 = vsel %vm329, 0.0, %v335
    %v340 = vmul.f32 %v321, %v338
    %v341 = vmul.f32 %v322, %v339
    %v342 = vadd.f32 %v340, %v319
    %v343 = vadd.f32 %v341, %v320
    %v344 = vmul.f32 %v321, %v330
    %v345 = vmul.f32 %v322, %v331
    %v348 = vrot.slane %v344, 4
    %v349 = vrot.slane %v345, 4
    %vm352 = vcmask 1043456
    %v353 = vsel %vm352, 1.0, %v348
    %v354 = vsel %vm352, 1.0, %v349
    %v357 = vrot.slane %v342, 4
    %v358 = vrot.slane %v343, 4
    %v361 = vsel %vm352, 0.0, %v357
    %v362 = vsel %vm352, 0.0, %v358
    %v363 = vmul.f32 %v344, %v361
    %v364 = vmul.f32 %v345, %v362
    %v365 = vadd.f32 %v363, %v342
    %v366 = vadd.f32 %v364, %v343
    %v367 = vmul.f32 %v344, %v353
    %v368 = vmul.f32 %v345, %v354
    %v369 = vld [vmem:[#allocation11] sm:$0x1]
    %v370 = vld [vmem:[#allocation11 + $0x1] sm:$0x1]
    %v373 = vperm.slane %v369, 0
    %v374 = vperm.slane %v370, 0
    %v377 = vmul.f32 %v367, %v373
    %v378 = vmul.f32 %v368, %v374
    %v379 = vadd.f32 %v377, %v365
    %v380 = vadd.f32 %v378, %v366
    %381 = vst.msk [vmem:[#allocation10] sm:$0xff] %vm110, %v379
    %382 = vst.msk [vmem:[#allocation10 + $0x8] sm:$0xff] %vm110, %v380
    %vm383 = vcmask 261127
    %384 = vst.msk [vmem:[#allocation11 - $0x7] sm:$0x80] %vm383, %v379
    %385 = vst.msk [vmem:[#allocation11 - $0x6] sm:$0x80] %vm383, %v380
    // Predicated region
    $region50: #{tpu_custom_call.1} parent=1 // pred_check
      _
    $region51: #{tpu_custom_call.1} parent=1 // pred_check_branch
      %387 = sbr.rel (0) target = $region53
    $region52: #{tpu_custom_call.1} parent=1 // pred_region
      %389 = vsyncadd [#allocation4], 0
      %s390 = sshll.u32 [#allocation10], 4
      %s391 = int_to_ptr.vmem [resolvable:$true] %s390
      %s392 = sshll.u32 %s7, 4
      %s393 = int_to_ptr.hbm [resolvable:$true] %s392
      %398 = dma.vmem_to_hbm [thread:$0]  %s391, 256, %s393, [#allocation4], 128, 128, 8
    $region53: #{tpu_custom_call.1} parent=1 // pred_fallthru
      _
    // Predicated region
    $region54: #{tpu_custom_call.1} parent=1 // pred_check
      _
    $region55: #{tpu_custom_call.1} parent=1 // pred_check_branch
      %400 = sbr.rel (0) target = $region57
    $region56: #{tpu_custom_call.1} parent=1 // pred_region
      %402 = vsyncadd [#allocation12], 0
      %s403 = sshll.u32 [#allocation11], 4
      %s404 = int_to_ptr.vmem [resolvable:$true] %s403
      %s405 = sshll.u32 %s8, 4
      %s406 = int_to_ptr.hbm [resolvable:$true] %s405
      %411 = dma.vmem_to_hbm [thread:$0]  %s404, 32, %s406, [#allocation12], 16, 16, 1
    $region57: #{tpu_custom_call.1} parent=1 // pred_fallthru
      _
    // Predicated region
    $region58: #{tpu_custom_call.1} parent=1 // pred_check
      _
    $region59: #{tpu_custom_call.1} parent=1 // pred_check_branch
      %413 = sbr.rel (0) target = $region61
    $region60: #{tpu_custom_call.1} parent=1 // pred_region
      %415 = dma.done [#allocation4], 256
    $region61: #{tpu_custom_call.1} parent=1 // pred_fallthru
      _
    // Predicated region
    $region62: #{tpu_custom_call.1} parent=1 // pred_check
      _
    $region63: #{tpu_custom_call.1} parent=1 // pred_check_branch
      %417 = sbr.rel (0) target = $region65
    $region64: #{tpu_custom_call.1} parent=1 // pred_region
      %419 = dma.done [#allocation12], 32
    $region65: #{tpu_custom_call.1} parent=1 // pred_fallthru
      _
    %420 = vsyncpa [#allocation3], 1
    %421 = vsyncpa [#allocation6], 1
    %422 = vsyncpa [#allocation9], 1
    %423 = vsyncpa [#allocation4], 1
    %424 = vsyncpa [#allocation12], 1

</llo_original>
